<compile_context>
chip_gen: v7x
topology: tpu7x:2x2x1
jax: 0.10.0
libtpu: 0.0.40
codegen_flags: <defaults>
</compile_context>

<pallas_src>
import functools
import math

import jax
import jax.numpy as jnp
from jax.experimental import pallas as pl
from jax.experimental.pallas import tpu as pltpu


def _round_up(x, m):
    return ((x + m - 1) // m) * m


# --------------------------------------------------------------------------- kernel
def _highway_kernel(x_ref, w_ref, b_ref, o_ref, *, tn, use_linear):
    """One (tm x tn) output tile of the Highway layer.

    x_ref: (tm, sp)        activations, native dtype (bf16 feeds the MXU directly)
    w_ref: (nmat, sp, tn)  column block of stacked [Wg^T, Wn^T, (Wl^T)], zero-padded
    b_ref: (nmat, 1, tn)   f32 biases (added post-accumulation)
    o_ref: (tm, tn)
    """
    x = x_ref[...]

    y_g = jnp.dot(x, w_ref[0], preferred_element_type=jnp.float32) + b_ref[0]
    y_n = jnp.dot(x, w_ref[1], preferred_element_type=jnp.float32) + b_ref[1]

    # sigmoid(y) == 0.5*tanh(0.5*y) + 0.5 : one EUP transcendental, no VALU divide.
    gate = 0.5 * jnp.tanh(0.5 * y_g) + 0.5
    non_linear = jnp.maximum(y_n, 0.0)            # activation = 'relu' (module default)

    if use_linear:
        linear = jnp.dot(x, w_ref[2], preferred_element_type=jnp.float32) + b_ref[2]
    else:
        if tn == x_ref.shape[1]:                  # single feature block: whole tile
            linear = x.astype(jnp.float32)
        else:                                     # column block j of the identity path
            col = pl.multiple_of(pl.program_id(0) * tn, 128)
            linear = x_ref[:, pl.ds(col, tn)].astype(jnp.float32)

    # gate*linear + (1-gate)*non_linear, rewritten to save a mul and a sub:
    o_ref[...] = (non_linear + gate * (linear - non_linear)).astype(o_ref.dtype)


# --------------------------------------------------------------------------- params
def init_highway_params(key, size, use_linear=False, dtype=jnp.float32):
    """Deterministic PyTorch-style init: U(-1/sqrt(size), 1/sqrt(size))."""
    bound = 1.0 / math.sqrt(size)

    def lin_init(k):
        kw, kb = jax.random.split(k)
        w = jax.random.uniform(kw, (size, size), dtype, -bound, bound)  # (out, in)
        b = jax.random.uniform(kb, (size,), dtype, -bound, bound)
        return w, b

    keys = jax.random.split(key, 3)
    wn, bn = lin_init(keys[0])
    wg, bg = lin_init(keys[1])
    params = {"wn": wn, "bn": bn, "wg": wg, "bg": bg}
    if use_linear:
        wl, bl = lin_init(keys[2])
        params.update({"wl": wl, "bl": bl})
    return params


def pack_highway_params(params, use_linear=False, compute_dtype=jnp.float32):
    """One-time weight prep. Call ONCE outside the hot path and reuse the result via
    highway_packed(): transpose to (in, out), zero-pad features to a multiple of 128
    (lane-dense), and stack gate / non-linear / (linear) weights into one
    (nmat, sp, sp) RHS the kernel can N-tile."""
    size = params["wg"].shape[0]
    sp = _round_up(size, 128)
    names = ["g", "n"] + (["l"] if use_linear else [])

    def pad_w(w):  # (out, in) -> (in, out), zero-padded to (sp, sp)
        wt = jnp.asarray(w).T
        return jnp.pad(wt, ((0, sp - size), (0, sp - size)))

    def pad_b(b):
        return jnp.pad(jnp.asarray(b, jnp.float32), (0, sp - size))

    # TODO(synk): optional fp8 weight path for v7x (quantize here, keep f32 accumulation).
    w_pack = jnp.stack([pad_w(params[f"w{n}"]) for n in names]).astype(compute_dtype)
    b_pack = jnp.stack([pad_b(params[f"b{n}"]) for n in names])[:, None, :]  # (nmat,1,sp) f32
    return {"w_pack": w_pack, "b_pack": b_pack, "size": size, "sp": sp,
            "nmat": len(names), "use_linear": use_linear}


# --------------------------------------------------------------------------- wrapper
def _vmem_budget():
    """Generation-aware VMEM budgeting (v5e/v6e: 128 MiB physical, v7x: 64 MiB)."""
    try:
        cap = int(pltpu.get_tpu_info().vmem_capacity_bytes)
    except Exception:
        cap = 64 * 1024 * 1024              # conservative fallback (v7x-sized)
    budget = (3 * cap) // 4                 # what we explicitly size buffers against
    limit = min((17 * cap) // 20, cap - (8 << 20))  # scoped request; headroom for scratch
    return budget, limit


_SINGLE_BUFFER_OK = [True]   # flipped off if this JAX build rejects pl.Buffered(1)


def highway_packed(x, packed, tm=None, tn=None):
    """Highway forward on pre-packed params. x: (..., size)."""
    size, sp, nmat = packed["size"], packed["sp"], packed["nmat"]
    use_linear = packed["use_linear"]
    w_pack, b_pack = packed["w_pack"], packed["b_pack"]

    orig_shape = x.shape
    x2 = x.reshape(-1, size)
    M = x2.shape[0]

    x_bytes = x2.dtype.itemsize
    w_bytes = w_pack.dtype.itemsize
    sub = max(8, 32 // x_bytes)          # native sublane tile: 8 f32 / 16 bf16 / 32 int8

    budget, limit = _vmem_budget()
    tm_req = tm if tm is not None else (512 if budget >= 80 * 1024 * 1024 else 256)
    user_tn = None if tn is None else max(128, min(_round_up(tn, 128), sp))

    def run(allow_single_buffer):
        # ---- N (output-feature) tiling: bound resident weight VMEM. ---------------
        single_buf = (allow_single_buffer
                      and user_tn in (None, sp)
                      and nmat * sp * sp * w_bytes <= budget // 2)
        if single_buf:
            tn_eff, w_bufs = sp, 1
        else:
            w_bufs = 2
            cands = [sp // d for d in range(1, sp // 128 + 1) if (sp // 128) % d == 0]
            tn_eff = 128
            for c in cands:                                  # descending divisors of sp
                if user_tn is not None and c > user_tn:
                    continue
                if w_bufs * nmat * sp * c * w_bytes <= budget // 2:
                    tn_eff = c
                    break
        n_blocks = sp // tn_eff

        # ---- row tile: as big as the VMEM budget allows, dtype-aware rounding. ----
        tm_eff = max(sub, min(_round_up(tm_req, sub), _round_up(M, sub)))

        def vmem_est(t):
            return (2 * t * sp * x_bytes                      # x tile (double-buffered)
                    + 2 * t * tn_eff * x_bytes                # out tile (double-buffered)
                    + w_bufs * nmat * sp * tn_eff * w_bytes   # fused weights
                    + w_bufs * nmat * 8 * tn_eff * 4          # biases (sublane-padded)
                    + t * (nmat + 2) * tn_eff * 4)            # f32 y / gate / linear temps

        while tm_eff > sub and vmem_est(tm_eff) > budget:
            tm_eff = max(sub, _round_up(tm_eff // 2, sub))

        # v7x megacore: keep >= 2 grid steps so the 'parallel' axes can shard.
        while tm_eff > sub and n_blocks * pl.cdiv(M, tm_eff) < 2:
            tm_eff = max(sub, _round_up(tm_eff // 2, sub))

        M_pad = _round_up(M, tm_eff)
        x_p = jnp.pad(x2, ((0, M_pad - M), (0, sp - size)))

        cost = pl.CostEstimate(
            flops=2 * M_pad * sp * nmat * sp,
            transcendentals=M_pad * sp,                       # sigmoid (tanh form)
            bytes_accessed=(n_blocks * M_pad * sp * x_bytes   # x (re-read per N block)
                            + nmat * sp * sp * w_bytes        # fused weights
                            + nmat * sp * 4                   # biases
                            + M_pad * sp * x_bytes),          # out
        )

        w_map = lambda j, i: (0, 0, j)
        b_map = lambda j, i: (0, 0, j)
        if single_buf:
            # Constant block index across the whole grid: double-buffering buys
            # nothing, single-buffer to halve the dominant VMEM consumer.
            w_spec = pl.BlockSpec((nmat, sp, tn_eff), w_map, pipeline_mode=pl.Buffered(1))
            b_spec = pl.BlockSpec((nmat, 1, tn_eff), b_map, pipeline_mode=pl.Buffered(1))
        else:
            w_spec = pl.BlockSpec((nmat, sp, tn_eff), w_map)
            b_spec = pl.BlockSpec((nmat, 1, tn_eff), b_map)

        return pl.pallas_call(
            functools.partial(_highway_kernel, tn=tn_eff, use_linear=use_linear),
            out_shape=jax.ShapeDtypeStruct((M_pad, sp), x.dtype),
            grid_spec=pltpu.PrefetchScalarGridSpec(
                num_scalar_prefetch=0,
                # Feature blocks outer, row tiles inner: the weight block stays
                # resident across the whole row sweep; x/out stream.
                grid=(n_blocks, M_pad // tm_eff),
                in_specs=[
                    pl.BlockSpec((tm_eff, sp), lambda j, i: (i, 0)),
                    w_spec,
                    b_spec,
                ],
                out_specs=pl.BlockSpec((tm_eff, tn_eff), lambda j, i: (i, j)),
            ),
            compiler_params=pltpu.CompilerParams(
                dimension_semantics=("parallel", "parallel"),
                vmem_limit_bytes=limit,
            ),
            cost_estimate=cost,
        )(x_p, w_pack, b_pack)

    if _SINGLE_BUFFER_OK[0]:
        try:
            out_p = run(True)
        except Exception:
            # This JAX build rejected pl.Buffered(1): rebuild with default buffering
            # (tiling is re-derived with 2x weight buffers accounted).
            _SINGLE_BUFFER_OK[0] = False
            out_p = run(False)
    else:
        out_p = run(False)

    return out_p[:M, :size].reshape(orig_shape)


def highway(x, params, use_linear=False, tm=None, tn=None):
    """Convenience wrapper from raw (PyTorch-layout) params. NOTE: this re-packs
    (transpose + pad + stack) the weights on every call; for repeated inference
    call pack_highway_params() once and reuse it via highway_packed()."""
    packed = pack_highway_params(params, use_linear=use_linear, compute_dtype=x.dtype)
    return highway_packed(x, packed, tm=tm, tn=tn)


# --------------------------------------------------------------------------- reference
def highway_ref(x, params, use_linear=False):
    """Pure-JAX reference matching the PyTorch module semantics."""
    gate = jax.nn.sigmoid(x @ params["wg"].T + params["bg"])
    non_linear = jnp.maximum(x @ params["wn"].T + params["bn"], 0.0)
    linear = (x @ params["wl"].T + params["bl"]) if use_linear else x
    return gate * linear + (1.0 - gate) * non_linear


if __name__ == "__main__":
    key = jax.random.PRNGKey(0)
    kx, kp, kp2 = jax.random.split(key, 3)

    batch, seq, size = 2, 8, 32
    x = jax.random.normal(kx, (batch, seq, size), jnp.float32)

    # default config: activation='relu', linear=False (pre-packed, production path)
    params = init_highway_params(kp, size, use_linear=False)
    packed = pack_highway_params(params, use_linear=False, compute_dtype=x.dtype)
    out = highway_packed(x, packed)
    jax.block_until_ready(out)
    ref = highway_ref(x, params, use_linear=False)
    assert out.shape == x.shape
    assert jnp.allclose(out, ref, atol=1e-5, rtol=1e-5), float(jnp.max(jnp.abs(out - ref)))

    # also exercise the linear=True branch (convenience wrapper)
    params_l = init_highway_params(kp2, size, use_linear=True)
    out_l = highway(x, params_l, use_linear=True)
    jax.block_until_ready(out_l)
    ref_l = highway_ref(x, params_l, use_linear=True)
    assert jnp.allclose(out_l, ref_l, atol=1e-5, rtol=1e-5), float(jnp.max(jnp.abs(out_l - ref_l)))

    print("KERNEL_OK")
</pallas_src>

<mosaic_0001>
module attributes {stable_mosaic.version = 11 : i64} {
  func.func @_highway_kernel(%arg0: i32, %arg1: i32, %arg2: memref<8x128xf32, #tpu.memory_space<vmem>>, %arg3: memref<2x128x128xf32, #tpu.memory_space<vmem>>, %arg4: memref<2x1x128xf32, #tpu.memory_space<vmem>>, %arg5: memref<8x128xf32, #tpu.memory_space<vmem>>) attributes {dimension_semantics = [#tpu.dimension_semantics<parallel>, #tpu.dimension_semantics<parallel>], iteration_bounds = array<i64: 1, 2>, scalar_prefetch = 0 : i64, scratch_operands = 0 : i64, tpu.core_type = #tpu.core_type<tc>, window_params = [{transform_indices = @transform_0, window_bounds = array<i64: 8, 128>}, {pipeline_mode = #tpu.pipeline_mode<synchronous>, transform_indices = @transform_1, window_bounds = array<i64: 2, 128, 128>}, {pipeline_mode = #tpu.pipeline_mode<synchronous>, transform_indices = @transform_2, window_bounds = array<i64: 2, 1, 128>}, {transform_indices = @transform_3, window_bounds = array<i64: 8, 128>}]} {
    %c0 = arith.constant 0 : index
    %c0_0 = arith.constant 0 : index
    %0 = vector.load %arg2[%c0, %c0_0] : memref<8x128xf32, #tpu.memory_space<vmem>>, vector<8x128xf32>
    %c0_1 = arith.constant 0 : index
    %c0_2 = arith.constant 0 : index
    %c0_3 = arith.constant 0 : index
    %1 = vector.load %arg3[%c0_1, %c0_2, %c0_3] : memref<2x128x128xf32, #tpu.memory_space<vmem>>, vector<1x128x128xf32>
    %2 = vector.shape_cast %1 : vector<1x128x128xf32> to vector<128x128xf32>
    %cst = arith.constant dense<0.000000e+00> : vector<8x128xf32>
    %3 = tpu.matmul %0, %2, %cst {dimension_numbers = #tpu.dot_dimension_numbers<[1], [0], [0], [1], [0, 0, 1, 1], [], []>} : vector<8x128xf32>, vector<128x128xf32>, vector<8x128xf32> -> vector<8x128xf32>
    %c0_4 = arith.constant 0 : index
    %c0_5 = arith.constant 0 : index
    %c0_6 = arith.constant 0 : index
    %4 = vector.load %arg4[%c0_4, %c0_5, %c0_6] : memref<2x1x128xf32, #tpu.memory_space<vmem>>, vector<1x1x128xf32>
    %5 = vector.shape_cast %4 : vector<1x1x128xf32> to vector<1x128xf32>
    %6 = vector.broadcast %5 : vector<1x128xf32> to vector<8x128xf32>
    %7 = arith.addf %3, %6 : vector<8x128xf32>
    %c1 = arith.constant 1 : index
    %c0_7 = arith.constant 0 : index
    %c0_8 = arith.constant 0 : index
    %8 = vector.load %arg3[%c1, %c0_7, %c0_8] : memref<2x128x128xf32, #tpu.memory_space<vmem>>, vector<1x128x128xf32>
    %9 = vector.shape_cast %8 : vector<1x128x128xf32> to vector<128x128xf32>
    %cst_9 = arith.constant dense<0.000000e+00> : vector<8x128xf32>
    %10 = tpu.matmul %0, %9, %cst_9 {dimension_numbers = #tpu.dot_dimension_numbers<[1], [0], [0], [1], [0, 0, 1, 1], [], []>} : vector<8x128xf32>, vector<128x128xf32>, vector<8x128xf32> -> vector<8x128xf32>
    %c1_10 = arith.constant 1 : index
    %c0_11 = arith.constant 0 : index
    %c0_12 = arith.constant 0 : index
    %11 = vector.load %arg4[%c1_10, %c0_11, %c0_12] : memref<2x1x128xf32, #tpu.memory_space<vmem>>, vector<1x1x128xf32>
    %12 = vector.shape_cast %11 : vector<1x1x128xf32> to vector<1x128xf32>
    %13 = vector.broadcast %12 : vector<1x128xf32> to vector<8x128xf32>
    %14 = arith.addf %10, %13 : vector<8x128xf32>
    %cst_13 = arith.constant 5.000000e-01 : f32
    %15 = vector.broadcast %cst_13 : f32 to vector<8x128xf32>
    %16 = arith.mulf %15, %7 : vector<8x128xf32>
    %17 = math.tanh %16 : vector<8x128xf32>
    %cst_14 = arith.constant 5.000000e-01 : f32
    %18 = vector.broadcast %cst_14 : f32 to vector<8x128xf32>
    %19 = arith.mulf %18, %17 : vector<8x128xf32>
    %cst_15 = arith.constant 5.000000e-01 : f32
    %20 = vector.broadcast %cst_15 : f32 to vector<8x128xf32>
    %21 = arith.addf %19, %20 : vector<8x128xf32>
    %cst_16 = arith.constant 0.000000e+00 : f32
    %22 = vector.broadcast %cst_16 : f32 to vector<8x128xf32>
    %23 = arith.maximumf %14, %22 : vector<8x128xf32>
    %24 = arith.subf %0, %23 : vector<8x128xf32>
    %25 = arith.mulf %21, %24 : vector<8x128xf32>
    %26 = arith.addf %23, %25 : vector<8x128xf32>
    %c0_17 = arith.constant 0 : index
    %c0_18 = arith.constant 0 : index
    %27 = vector.load %arg5[%c0_17, %c0_18] : memref<8x128xf32, #tpu.memory_space<vmem>>, vector<8x128xf32>
    tpu.vector_store %arg5[%c0_17, %c0_18], %26 {strides = array<i32>} : memref<8x128xf32, #tpu.memory_space<vmem>>, vector<8x128xf32>,
    return
  }
  func.func @transform_0(%arg0: i32, %arg1: i32) -> (i32, i32) {
    %c0_i32 = arith.constant 0 : i32
    %c0_i32_0 = arith.constant 0 : i32
    return %arg1, %c0_i32 : i32, i32
  }
  func.func @transform_1(%arg0: i32, %arg1: i32) -> (i32, i32, i32) {
    %c0_i32 = arith.constant 0 : i32
    %c0_i32_0 = arith.constant 0 : i32
    %c0_i32_1 = arith.constant 0 : i32
    return %c0_i32, %c0_i32_0, %arg0 : i32, i32, i32
  }
  func.func @transform_2(%arg0: i32, %arg1: i32) -> (i32, i32, i32) {
    %c0_i32 = arith.constant 0 : i32
    %c0_i32_0 = arith.constant 0 : i32
    %c0_i32_1 = arith.constant 0 : i32
    return %c0_i32, %c0_i32_0, %arg0 : i32, i32, i32
  }
  func.func @transform_3(%arg0: i32, %arg1: i32) -> (i32, i32) {
    %c0_i32 = arith.constant 0 : i32
    return %arg1, %arg0 : i32, i32
  }
}

module attributes {stable_mosaic.version = 11 : i64} {
  func.func @_highway_kernel(%arg0: i32, %arg1: i32, %arg2: memref<8x128xf32, #tpu.memory_space<vmem>>, %arg3: memref<2x128x128xf32, #tpu.memory_space<vmem>>, %arg4: memref<2x1x128xf32, #tpu.memory_space<vmem>>, %arg5: memref<8x128xf32, #tpu.memory_space<vmem>>) attributes {dimension_semantics = [#tpu.dimension_semantics<parallel>, #tpu.dimension_semantics<parallel>], iteration_bounds = array<i64: 1, 2>, scalar_prefetch = 0 : i64, scratch_operands = 0 : i64, tpu.core_type = #tpu.core_type<tc>, window_params = [{transform_indices = @transform_0, window_bounds = array<i64: 8, 128>}, {transform_indices = @transform_1, window_bounds = array<i64: 2, 128, 128>}, {transform_indices = @transform_2, window_bounds = array<i64: 2, 1, 128>}, {transform_indices = @transform_3, window_bounds = array<i64: 8, 128>}]} {
    %c0 = arith.constant 0 : index
    %c0_0 = arith.constant 0 : index
    %0 = vector.load %arg2[%c0, %c0_0] : memref<8x128xf32, #tpu.memory_space<vmem>>, vector<8x128xf32>
    %c0_1 = arith.constant 0 : index
    %c0_2 = arith.constant 0 : index
    %c0_3 = arith.constant 0 : index
    %1 = vector.load %arg3[%c0_1, %c0_2, %c0_3] : memref<2x128x128xf32, #tpu.memory_space<vmem>>, vector<1x128x128xf32>
    %2 = vector.shape_cast %1 : vector<1x128x128xf32> to vector<128x128xf32>
    %cst = arith.constant dense<0.000000e+00> : vector<8x128xf32>
    %3 = tpu.matmul %0, %2, %cst {dimension_numbers = #tpu.dot_dimension_numbers<[1], [0], [0], [1], [0, 0, 1, 1], [], []>} : vector<8x128xf32>, vector<128x128xf32>, vector<8x128xf32> -> vector<8x128xf32>
    %c0_4 = arith.constant 0 : index
    %c0_5 = arith.constant 0 : index
    %c0_6 = arith.constant 0 : index
    %4 = vector.load %arg4[%c0_4, %c0_5, %c0_6] : memref<2x1x128xf32, #tpu.memory_space<vmem>>, vector<1x1x128xf32>
    %5 = vector.shape_cast %4 : vector<1x1x128xf32> to vector<1x128xf32>
    %6 = vector.broadcast %5 : vector<1x128xf32> to vector<8x128xf32>
    %7 = arith.addf %3, %6 : vector<8x128xf32>
    %c1 = arith.constant 1 : index
    %c0_7 = arith.constant 0 : index
    %c0_8 = arith.constant 0 : index
    %8 = vector.load %arg3[%c1, %c0_7, %c0_8] : memref<2x128x128xf32, #tpu.memory_space<vmem>>, vector<1x128x128xf32>
    %9 = vector.shape_cast %8 : vector<1x128x128xf32> to vector<128x128xf32>
    %cst_9 = arith.constant dense<0.000000e+00> : vector<8x128xf32>
    %10 = tpu.matmul %0, %9, %cst_9 {dimension_numbers = #tpu.dot_dimension_numbers<[1], [0], [0], [1], [0, 0, 1, 1], [], []>} : vector<8x128xf32>, vector<128x128xf32>, vector<8x128xf32> -> vector<8x128xf32>
    %c1_10 = arith.constant 1 : index
    %c0_11 = arith.constant 0 : index
    %c0_12 = arith.constant 0 : index
    %11 = vector.load %arg4[%c1_10, %c0_11, %c0_12] : memref<2x1x128xf32, #tpu.memory_space<vmem>>, vector<1x1x128xf32>
    %12 = vector.shape_cast %11 : vector<1x1x128xf32> to vector<1x128xf32>
    %13 = vector.broadcast %12 : vector<1x128xf32> to vector<8x128xf32>
    %14 = arith.addf %10, %13 : vector<8x128xf32>
    %cst_13 = arith.constant 5.000000e-01 : f32
    %15 = vector.broadcast %cst_13 : f32 to vector<8x128xf32>
    %16 = arith.mulf %15, %7 : vector<8x128xf32>
    %17 = math.tanh %16 : vector<8x128xf32>
    %cst_14 = arith.constant 5.000000e-01 : f32
    %18 = vector.broadcast %cst_14 : f32 to vector<8x128xf32>
    %19 = arith.mulf %18, %17 : vector<8x128xf32>
    %cst_15 = arith.constant 5.000000e-01 : f32
    %20 = vector.broadcast %cst_15 : f32 to vector<8x128xf32>
    %21 = arith.addf %19, %20 : vector<8x128xf32>
    %cst_16 = arith.constant 0.000000e+00 : f32
    %22 = vector.broadcast %cst_16 : f32 to vector<8x128xf32>
    %23 = arith.maximumf %14, %22 : vector<8x128xf32>
    %24 = arith.subf %0, %23 : vector<8x128xf32>
    %25 = arith.mulf %21, %24 : vector<8x128xf32>
    %26 = arith.addf %23, %25 : vector<8x128xf32>
    %c0_17 = arith.constant 0 : index
    %c0_18 = arith.constant 0 : index
    %27 = vector.load %arg5[%c0_17, %c0_18] : memref<8x128xf32, #tpu.memory_space<vmem>>, vector<8x128xf32>
    tpu.vector_store %arg5[%c0_17, %c0_18], %26 {strides = array<i32>} : memref<8x128xf32, #tpu.memory_space<vmem>>, vector<8x128xf32>,
    return
  }
  func.func @transform_0(%arg0: i32, %arg1: i32) -> (i32, i32) {
    %c0_i32 = arith.constant 0 : i32
    %c0_i32_0 = arith.constant 0 : i32
    return %arg1, %c0_i32 : i32, i32
  }
  func.func @transform_1(%arg0: i32, %arg1: i32) -> (i32, i32, i32) {
    %c0_i32 = arith.constant 0 : i32
    %c0_i32_0 = arith.constant 0 : i32
    %c0_i32_1 = arith.constant 0 : i32
    return %c0_i32, %c0_i32_0, %arg0 : i32, i32, i32
  }
  func.func @transform_2(%arg0: i32, %arg1: i32) -> (i32, i32, i32) {
    %c0_i32 = arith.constant 0 : i32
    %c0_i32_0 = arith.constant 0 : i32
    %c0_i32_1 = arith.constant 0 : i32
    return %c0_i32, %c0_i32_0, %arg0 : i32, i32, i32
  }
  func.func @transform_3(%arg0: i32, %arg1: i32) -> (i32, i32) {
    %c0_i32 = arith.constant 0 : i32
    return %arg1, %arg0 : i32, i32
  }
}

</mosaic_0001>

<llo_original>
// kernel: tpu_custom_call.1
$region0: #{tpu_custom_call.1}
  #allocation0 [shape = 'u32[]', space=smem, size = 0x4, offset = 0x4, fixed_abs, tag = 'smem constant byte address 0x4 - core index']
  #allocation1 [shape = 'u32[144,128]{1,0:T(1,128)}', space=vmem, size = 0x12000, scoped, tag = 'internal scratch']
  %s0 = inlined_call_operand.hbm [shape: f32[16,128], index: 0, kind: input, shape index: {}]
  %s1 = inlined_call_operand.hbm [shape: f32[2,128,128], index: 1, kind: input, shape index: {}]
  %s2 = inlined_call_operand.vmem [shape: f32[2,1,128], index: 2, kind: input, shape index: {}]
  %s3 = inlined_call_operand.hbm [shape: f32[16,128], index: 3, kind: output, shape index: {}]
  %s4 = sld [smem:[#allocation0]]
  $region53: #{tpu_custom_call.1} parent=0
    _
  %s6 = ssub.s32 1, %s4
  %s7 = scalar_select 0, %s6, %s4
  $region1: #{tpu_custom_call.1} parent=0
    #allocation2 [shape = 'u8[8192]{0}', space=vmem, size = 0x2000, scoped, tag = 'input window, operand 0']
    #allocation3 [shape = 's32[2]{0}', space=sflag, size = 0x8, scoped, tag = 'scoped memory for tpu_custom_call.1']
    #allocation4 [shape = 's32[2]{0}', space=sflag, size = 0x8, scoped, tag = 'scoped memory for tpu_custom_call.1']
    #allocation5 [shape = 'u8[131072]{0}', space=vmem, size = 0x20000, scoped, tag = 'input window, operand 1, single buffered']
    #allocation6 [shape = 's32[1]{0}', space=sflag, size = 0x4, scoped, tag = 'scoped memory for tpu_custom_call.1']
    #allocation7 [shape = 'u8[8192]{0}', space=vmem, size = 0x2000, scoped, tag = 'output window, operand 0']
    %8 = vsyncpa [#allocation3], 0
    %s9 = scalar_lea.sflag [#allocation3], 1
    %10 = vsyncpa %s9, 0
    %11 = vsyncpa [#allocation6], 0
    %12 = vsyncpa [#allocation4], 0
    %s13 = scalar_lea.sflag [#allocation4], 1
    %14 = vsyncpa %s13, 0
    loop: start=0, step=1, limit=4
    $region2: #{tpu_custom_call.1} parent=1 // loop_pre_header
      _
    $region3: #{tpu_custom_call.1} parent=1 // loop_header
      %s16 = sphi 0, %s20
      %p17 = scmp.ge.s32.totalorder %s16, 4
      %s23 = sphi 0, %s35
      %s24 = sphi 0, %s31
      %s25 = sphi 0, %s23
      %s26 = sphi 0, %s24
      %s27 = sphi 0, %s25
      %s28 = sphi 0, %s26
      %s38 = sphi 0, %s40
      %s41 = sphi 0, %s38
      %s42 = sphi 0, %s41
      %s58 = sphi 0, %s42
      %s64 = sphi 0, %s66
      %s67 = sphi 0, %s64
      %s68 = sphi 0, %s67
      %s84 = sphi 0, %s68
      %s90 = sphi 0, %s92
      %s93 = sphi 0, %s90
      %s94 = sphi 0, %s93
      %s110 = sphi 0, %s94
      %s118 = sphi 0, %s120
      %s121 = sphi 0, %s118
      %s122 = sphi 0, %s121
      %s138 = sphi 0, %s122
    $region4: #{tpu_custom_call.1} parent=1 // loop_header_branch
      %19 = sbr.rel (%p17) target = $region8
    $region5: #{tpu_custom_call.1} parent=1 // loop_body
      %s21 = ssub.s32 %s16, 1
      %s22 = ssub.s32 %s16, 2
      %s29 = sadd.s32 1, %s24
      %p30 = scmp.ge.s32.totalorder %s29, 2
      %s31 = scalar_select %p30, 0, %s29
      %s32 = sadd.s32 1, %s23
      %s33 = scalar_select %p30, %s32, %s23
      %p34 = scmp.ge.s32.totalorder %s33, 1
      %s35 = scalar_select %p34, 0, %s33
      %s36 = ssub.s32 %s24, %s31
      %p37 = scmp.eq.s32.totalorder %s36, 0
      %s39 = sadd.s32 %s38, 1
      %s40 = scalar_select %p37, %s38, %s39
      %p43 = pneg %p37
      %p44 = scmp.eq.s32.totalorder %s16, 1
      %p45 = por %p43, %p44
      %p46 = scmp.ne.s32.totalorder %s38, %s41
      %p47 = scmp.eq.s32.totalorder %s16, 0
      %p48 = por %p46, %p47
      %p49 = scmp.ne.s32.totalorder %s38, %s41
      %p50 = scmp.eq.s32.totalorder %s21, 1
      %p51 = por %p49, %p50
      %p52 = scmp.ne.s32.totalorder %s41, %s42
      %p53 = scmp.eq.s32.totalorder %s21, 0
      %p54 = por %p52, %p53
      %p55 = scmp.ne.s32.totalorder %s41, %s42
      %p56 = scmp.eq.s32.totalorder %s22, 1
      %p57 = por %p55, %p56
      %p59 = scmp.ne.s32.totalorder %s42, %s58
      %p60 = scmp.eq.s32.totalorder %s22, 0
      %p61 = por %p59, %p60
      %s62 = ssub.s32 %s23, %s35
      %p63 = scmp.eq.s32.totalorder %s62, 0
      %s65 = sadd.s32 %s64, 1
      %s66 = scalar_select %p63, %s64, %s65
      %p69 = pneg %p63
      %p70 = scmp.eq.s32.totalorder %s16, 1
      %p71 = por %p69, %p70
      %p72 = scmp.ne.s32.totalorder %s64, %s67
      %p73 = scmp.eq.s32.totalorder %s16, 0
      %p74 = por %p72, %p73
      %p75 = scmp.ne.s32.totalorder %s64, %s67
      %p76 = scmp.eq.s32.totalorder %s21, 1
      %p77 = por %p75, %p76
      %p78 = scmp.ne.s32.totalorder %s67, %s68
      %p79 = scmp.eq.s32.totalorder %s21, 0
      %p80 = por %p78, %p79
      %p81 = scmp.ne.s32.totalorder %s67, %s68
      %p82 = scmp.eq.s32.totalorder %s22, 1
      %p83 = por %p81, %p82
      %p85 = scmp.ne.s32.totalorder %s68, %s84
      %p86 = scmp.eq.s32.totalorder %s22, 0
      %p87 = por %p85, %p86
      %s88 = ssub.s32 %s23, %s35
      %p89 = scmp.eq.s32.totalorder %s88, 0
      %s91 = sadd.s32 %s90, 1
      %s92 = scalar_select %p89, %s90, %s91
      %p95 = pneg %p89
      %p96 = scmp.eq.s32.totalorder %s16, 1
      %p97 = por %p95, %p96
      %p98 = scmp.ne.s32.totalorder %s90, %s93
      %p99 = scmp.eq.s32.totalorder %s16, 0
      %p100 = por %p98, %p99
      %p101 = scmp.ne.s32.totalorder %s90, %s93
      %p102 = scmp.eq.s32.totalorder %s21, 1
      %p103 = por %p101, %p102
      %p104 = scmp.ne.s32.totalorder %s93, %s94
      %p105 = scmp.eq.s32.totalorder %s21, 0
      %p106 = por %p104, %p105
      %p107 = scmp.ne.s32.totalorder %s93, %s94
      %p108 = scmp.eq.s32.totalorder %s22, 1
      %p109 = por %p107, %p108
      %p111 = scmp.ne.s32.totalorder %s94, %s110
      %p112 = scmp.eq.s32.totalorder %s22, 0
      %p113 = por %p111, %p112
      %s114 = ssub.s32 %s24, %s31
      %s115 = ssub.s32 %s23, %s35
      %s116 = sor.u32 %s114, %s115
      %p117 = scmp.eq.s32.totalorder %s116, 0
      %s119 = sadd.s32 %s118, 1
      %s120 = scalar_select %p117, %s118, %s119
      %p123 = pneg %p117
      %p124 = scmp.eq.s32.totalorder %s16, 1
      %p125 = por %p123, %p124
      %p126 = scmp.ne.s32.totalorder %s118, %s121
      %p127 = scmp.eq.s32.totalorder %s16, 0
      %p128 = por %p126, %p127
      %p129 = scmp.ne.s32.totalorder %s118, %s121
      %p130 = scmp.eq.s32.totalorder %s21, 1
      %p131 = por %p129, %p130
      %p132 = scmp.ne.s32.totalorder %s121, %s122
      %p133 = scmp.eq.s32.totalorder %s21, 0
      %p134 = por %p132, %p133
      %p135 = scmp.ne.s32.totalorder %s121, %s122
      %p136 = scmp.eq.s32.totalorder %s22, 1
      %p137 = por %p135, %p136
      %p139 = scmp.ne.s32.totalorder %s122, %s138
      %p140 = scmp.eq.s32.totalorder %s22, 0
      %p141 = por %p139, %p140
      %p142 = scmp.le.s32.totalorder 1, %s16
      %p143 = scmp.lt.s32.totalorder %s16, 3
      %p144 = pnand %p142, %p143
      %p145 = pneg %p144
      // Predicated region
      $region9: #{tpu_custom_call.1} parent=5 // pred_check
        _
      $region10: #{tpu_custom_call.1} parent=5 // pred_check_branch
        %147 = sbr.rel (%p144) target = $region12
      $region11: #{tpu_custom_call.1} parent=5 // pred_region
        %s148 = ssub.s32 %s16, 1
        // Predicated region
        $region13: #{tpu_custom_call.1} parent=11 // pred_check
          %p149 = pneg %p80
        $region14: #{tpu_custom_call.1} parent=11 // pred_check_branch
          %151 = sbr.rel (%p149) target = $region16
        $region15: #{tpu_custom_call.1} parent=11 // pred_region
          %s153 = ssub.s32 4096, 4096
          %154 = vsyncadd [#allocation6], %s153
          %s155 = smul.addr %s25, 128
          %s156 = scalar_lea.hbm %s1, %s155
          %s157 = sshll.u32 [#allocation5], 4
          %s158 = int_to_ptr.vmem [resolvable:$true] %s157
          %163 = dma.hbm_to_vmem [thread:$0]  %s156, 4096, %s158, [#allocation6], 128, 128, 8
        $region16: #{tpu_custom_call.1} parent=11 // pred_fallthru
          _
        // Predicated region
        $region17: #{tpu_custom_call.1} parent=11 // pred_check
          %p164 = pneg %p106
        $region18: #{tpu_custom_call.1} parent=11 // pred_check_branch
          %166 = sbr.rel (%p164) target = $region20
        $region19: #{tpu_custom_call.1} parent=11 // pred_region
          %p167 = scmp.lt.s32.totalorder %s25, 0
          %s168 = scalar_select %p167, %s25, 0
          %s169 = scalar_lea.vmem %s2, %s168
        $region20: #{tpu_custom_call.1} parent=11 // pred_fallthru
          _
      $region12: #{tpu_custom_call.1} parent=5 // pred_fallthru
        _
      %p170 = scmp.lt.s32.totalorder %s16, 2
      // Predicated region
      $region21: #{tpu_custom_call.1} parent=5 // pred_check
        %p171 = pneg %p170
      $region22: #{tpu_custom_call.1} parent=5 // pred_check_branch
        %173 = sbr.rel (%p171) target = $region24
      $region23: #{tpu_custom_call.1} parent=5 // pred_region
        // Predicated region
        $region25: #{tpu_custom_call.1} parent=23 // pred_check
          %p174 = pneg %p48
        $region26: #{tpu_custom_call.1} parent=23 // pred_check_branch
          %176 = sbr.rel (%p174) target = $region28
        $region27: #{tpu_custom_call.1} parent=23 // pred_region
          %s177 = sand.u32 %s38, 1
          %s178 = scalar_lea.sflag [#allocation3], %s177
          %s179 = sand.u32 %s38, 1
          %s180 = smul.addr %s179, 8
          %s181 = scalar_lea.vmem [#allocation2], %s180
          %s183 = ssub.s32 128, 128
          %184 = vsyncadd %s178, %s183
          %s185 = smul.addr %s24, 128
          %s186 = scalar_lea.hbm %s0, %s185
          %s188 = sshll.u32 %s181, 4
          %s189 = int_to_ptr.vmem [resolvable:$true] %s188
          %191 = dma.hbm_to_vmem [thread:$0]  %s186, 128, %s189, %s178
        $region28: #{tpu_custom_call.1} parent=23 // pred_fallthru
          _
      $region24: #{tpu_custom_call.1} parent=5 // pred_fallthru
        _
      %p192 = scmp.le.s32.totalorder 1, %s16
      %p193 = scmp.lt.s32.totalorder %s16, 3
      %p194 = pnand %p192, %p193
      %p195 = pneg %p194
      // Predicated region
      $region29: #{tpu_custom_call.1} parent=5 // pred_check
        _
      $region30: #{tpu_custom_call.1} parent=5 // pred_check_branch
        %197 = sbr.rel (%p194) target = $region32
      $region31: #{tpu_custom_call.1} parent=5 // pred_region
        %s198 = ssub.s32 %s16, 1
        %s199 = sand.u32 %s41, 1
        %s200 = scalar_lea.sflag [#allocation3], %s199
        %s201 = sand.u32 %s41, 1
        %s202 = smul.addr %s201, 8
        %s203 = scalar_lea.vmem [#allocation2], %s202
        // Predicated region
        $region33: #{tpu_custom_call.1} parent=31 // pred_check
          %p204 = pneg %p54
        $region34: #{tpu_custom_call.1} parent=31 // pred_check_branch
          %206 = sbr.rel (%p204) target = $region36
        $region35: #{tpu_custom_call.1} parent=31 // pred_region
          %207 = dma.done %s200, 128
        $region36: #{tpu_custom_call.1} parent=31 // pred_fallthru
          _
        // Predicated region
        $region37: #{tpu_custom_call.1} parent=31 // pred_check
          %p208 = pneg %p80
        $region38: #{tpu_custom_call.1} parent=31 // pred_check_branch
          %210 = sbr.rel (%p208) target = $region40
        $region39: #{tpu_custom_call.1} parent=31 // pred_region
          %211 = dma.done [#allocation6], 4096
        $region40: #{tpu_custom_call.1} parent=31 // pred_fallthru
          _
        %s212 = sand.u32 %s41, 1
        %s213 = scalar_lea.sflag [#allocation3], %s212
        %s214 = sand.u32 %s41, 1
        %s215 = smul.addr %s214, 8
        %s216 = scalar_lea.vmem [#allocation2], %s215
        %p217 = pneg %p54
        %p218 = pneg %p51
        %p219 = pneg %p80
        %p220 = pneg %p77
        %p221 = scmp.lt.s32.totalorder %s25, 0
        %s222 = scalar_select %p221, %s25, 0
        %s223 = scalar_lea.vmem %s2, %s222
        %p224 = pneg %p106
        %p225 = pneg %p103
        %p226 = pneg %p134
        %p227 = pneg %p131
        %s228 = sand.u32 %s121, 1
        %s229 = scalar_lea.sflag [#allocation4], %s228
        %s230 = sand.u32 %s121, 1
        %s231 = smul.addr %s230, 8
        %s232 = scalar_lea.vmem [#allocation7], %s231
        %p233 = scmp.lt.s32.totalorder %s25, 0
        %s234 = scalar_select %p233, %s25, 0
        %s235 = scalar_lea.vmem %s2, %s234
        %v236 = vld [vmem:[%s203] sm:$0xff]
        %v237 = vld [vmem:[#allocation5] sm:$0xff]
        %v238 = vld [vmem:[#allocation5 + $0x8] sm:$0xff]
        %v239 = vld [vmem:[#allocation5 + $0x10] sm:$0xff]
        %v240 = vld [vmem:[#allocation5 + $0x18] sm:$0xff]
        %v241 = vld [vmem:[#allocation5 + $0x20] sm:$0xff]
        %v242 = vld [vmem:[#allocation5 + $0x28] sm:$0xff]
        %v243 = vld [vmem:[#allocation5 + $0x30] sm:$0xff]
        %v244 = vld [vmem:[#allocation5 + $0x38] sm:$0xff]
        %v245 = vld [vmem:[#allocation5 + $0x40] sm:$0xff]
        %v246 = vld [vmem:[#allocation5 + $0x48] sm:$0xff]
        %v247 = vld [vmem:[#allocation5 + $0x50] sm:$0xff]
        %v248 = vld [vmem:[#allocation5 + $0x58] sm:$0xff]
        %v249 = vld [vmem:[#allocation5 + $0x60] sm:$0xff]
        %v250 = vld [vmem:[#allocation5 + $0x68] sm:$0xff]
        %v251 = vld [vmem:[#allocation5 + $0x70] sm:$0xff]
        %v252 = vld [vmem:[#allocation5 + $0x78] sm:$0xff]
        %v253 = vld [vmem:[%s235] sm:$0x1]
        %v255 = vlaneseq
        %v256 = vshrl.u32 %v255, 7
        %v257 = vsub.s32 0, %v256
        %v258 = vrot.slane %v253, %v257
        %260 = vmatprep.subr.mxu0 0.0
        %261 = vmatpush1.msra.mxu0 %v237
        %262 = vmatprep.subr.mxu0 0.0
        %263 = vmatpush1.msra.mxu0 %v238
        %264 = vmatprep.subr.mxu0 0.0
        %265 = vmatpush1.msra.mxu0 %v239
        %266 = vmatprep.subr.mxu0 0.0
        %267 = vmatpush1.msra.mxu0 %v240
        %268 = vmatprep.subr.mxu0 0.0
        %269 = vmatpush1.msra.mxu0 %v241
        %270 = vmatprep.subr.mxu0 0.0
        %271 = vmatpush1.msra.mxu0 %v242
        %272 = vmatprep.subr.mxu0 0.0
        %273 = vmatpush1.msra.mxu0 %v243
        %274 = vmatprep.subr.mxu0 0.0
        %275 = vmatpush1.msra.mxu0 %v244
        %276 = vmatprep.subr.mxu0 0.0
        %277 = vmatpush1.msra.mxu0 %v245
        %278 = vmatprep.subr.mxu0 0.0
        %279 = vmatpush1.msra.mxu0 %v246
        %280 = vmatprep.subr.mxu0 0.0
        %281 = vmatpush1.msra.mxu0 %v247
        %282 = vmatprep.subr.mxu0 0.0
        %283 = vmatpush1.msra.mxu0 %v248
        %284 = vmatprep.subr.mxu0 0.0
        %285 = vmatpush1.msra.mxu0 %v249
        %286 = vmatprep.subr.mxu0 0.0
        %287 = vmatpush1.msra.mxu0 %v250
        %288 = vmatprep.subr.mxu0 0.0
        %289 = vmatpush1.msra.mxu0 %v251
        %290 = vmatprep.subr.mxu0 0.0
        %291 = vmatpush1.msra.mxu0 %v252
        %292 = vmatprep.subr.mxu0 0.0
        %293 = vmatpush1.msra.mxu0 0.0
        %294 = vmatprep.subr.mxu0 0.0
        %295 = vmatpush1.msra.mxu0 0.0
        %296 = vmatprep.subr.mxu0 0.0
        %297 = vmatpush1.msra.mxu0 0.0
        %298 = vmatprep.subr.mxu0 0.0
        %299 = vmatpush1.msra.mxu0 0.0
        %300 = vmatprep.subr.mxu0 0.0
        %301 = vmatpush1.msra.mxu0 0.0
        %302 = vmatprep.subr.mxu0 0.0
        %303 = vmatpush1.msra.mxu0 0.0
        %304 = vmatprep.subr.mxu0 0.0
        %305 = vmatpush1.msra.mxu0 0.0
        %306 = vmatprep.subr.mxu0 0.0
        %307 = vmatpush1.msra.mxu0 0.0
        %308 = vmatprep.subr.mxu0 0.0
        %309 = vmatpush1.msra.mxu0 0.0
        %310 = vmatprep.subr.mxu0 0.0
        %311 = vmatpush1.msra.mxu0 0.0
        %312 = vmatprep.subr.mxu0 0.0
        %313 = vmatpush1.msra.mxu0 0.0
        %314 = vmatprep.subr.mxu0 0.0
        %315 = vmatpush1.msra.mxu0 0.0
        %316 = vmatprep.subr.mxu0 0.0
        %317 = vmatpush1.msra.mxu0 0.0
        %318 = vmatprep.subr.mxu0 0.0
        %319 = vmatpush1.msra.mxu0 0.0
        %320 = vmatprep.subr.mxu0 0.0
        %321 = vmatpush1.msra.mxu0 0.0
        %322 = vmatprep.subr.mxu0 0.0
        %323 = vmatpush1.msra.mxu0 0.0
        %324 = vmatprep.mubr.f32.mxu0 0.0
        %325 = vmatmul.mubr.f32.gmra.mrb[0].mxu0 %v236
        %v326 = vpop.f32.mrb[0].mxu0
        %v327 = vadd.f32 %v258, %v326
        %v328 = vpop.f32.mrb[0].mxu0
        %329 = vdwg.mxu0
        %s330 = scalar_lea.vmem [#allocation5], 128
        %v331 = vld [vmem:[%s330] sm:$0xff]
        %v332 = vld [vmem:[%s330 + $0x8] sm:$0xff]
        %v333 = vld [vmem:[%s330 + $0x10] sm:$0xff]
        %v334 = vld [vmem:[%s330 + $0x18] sm:$0xff]
        %v335 = vld [vmem:[%s330 + $0x20] sm:$0xff]
        %v336 = vld [vmem:[%s330 + $0x28] sm:$0xff]
        %v337 = vld [vmem:[%s330 + $0x30] sm:$0xff]
        %v338 = vld [vmem:[%s330 + $0x38] sm:$0xff]
        %v339 = vld [vmem:[%s330 + $0x40] sm:$0xff]
        %v340 = vld [vmem:[%s330 + $0x48] sm:$0xff]
        %v341 = vld [vmem:[%s330 + $0x50] sm:$0xff]
        %v342 = vld [vmem:[%s330 + $0x58] sm:$0xff]
        %v343 = vld [vmem:[%s330 + $0x60] sm:$0xff]
        %v344 = vld [vmem:[%s330 + $0x68] sm:$0xff]
        %v345 = vld [vmem:[%s330 + $0x70] sm:$0xff]
        %v346 = vld [vmem:[%s330 + $0x78] sm:$0xff]
        %s347 = scalar_lea.vmem %s235, 1
        %v348 = vld [vmem:[%s347] sm:$0x1]
        %v350 = vlaneseq
        %v351 = vshrl.u32 %v350, 7
        %v352 = vsub.s32 0, %v351
        %v353 = vrot.slane %v348, %v352
        %355 = vmatprep.subr.mxu0 0.0
        %356 = vmatpush1.msra.mxu0 %v331
        %357 = vmatprep.subr.mxu0 0.0
        %358 = vmatpush1.msra.mxu0 %v332
        %359 = vmatprep.subr.mxu0 0.0
        %360 = vmatpush1.msra.mxu0 %v333
        %361 = vmatprep.subr.mxu0 0.0
        %362 = vmatpush1.msra.mxu0 %v334
        %363 = vmatprep.subr.mxu0 0.0
        %364 = vmatpush1.msra.mxu0 %v335
        %365 = vmatprep.subr.mxu0 0.0
        %366 = vmatpush1.msra.mxu0 %v336
        %367 = vmatprep.subr.mxu0 0.0
        %368 = vmatpush1.msra.mxu0 %v337
        %369 = vmatprep.subr.mxu0 0.0
        %370 = vmatpush1.msra.mxu0 %v338
        %371 = vmatprep.subr.mxu0 0.0
        %372 = vmatpush1.msra.mxu0 %v339
        %373 = vmatprep.subr.mxu0 0.0
        %374 = vmatpush1.msra.mxu0 %v340
        %375 = vmatprep.subr.mxu0 0.0
        %376 = vmatpush1.msra.mxu0 %v341
        %377 = vmatprep.subr.mxu0 0.0
        %378 = vmatpush1.msra.mxu0 %v342
        %379 = vmatprep.subr.mxu0 0.0
        %380 = vmatpush1.msra.mxu0 %v343
        %381 = vmatprep.subr.mxu0 0.0
        %382 = vmatpush1.msra.mxu0 %v344
        %383 = vmatprep.subr.mxu0 0.0
        %384 = vmatpush1.msra.mxu0 %v345
        %385 = vmatprep.subr.mxu0 0.0
        %386 = vmatpush1.msra.mxu0 %v346
        %387 = vmatprep.subr.mxu0 0.0
        %388 = vmatpush1.msra.mxu0 0.0
        %389 = vmatprep.subr.mxu0 0.0
        %390 = vmatpush1.msra.mxu0 0.0
        %391 = vmatprep.subr.mxu0 0.0
        %392 = vmatpush1.msra.mxu0 0.0
        %393 = vmatprep.subr.mxu0 0.0
        %394 = vmatpush1.msra.mxu0 0.0
        %395 = vmatprep.subr.mxu0 0.0
        %396 = vmatpush1.msra.mxu0 0.0
        %397 = vmatprep.subr.mxu0 0.0
        %398 = vmatpush1.msra.mxu0 0.0
        %399 = vmatprep.subr.mxu0 0.0
        %400 = vmatpush1.msra.mxu0 0.0
        %401 = vmatprep.subr.mxu0 0.0
        %402 = vmatpush1.msra.mxu0 0.0
        %403 = vmatprep.subr.mxu0 0.0
        %404 = vmatpush1.msra.mxu0 0.0
        %405 = vmatprep.subr.mxu0 0.0
        %406 = vmatpush1.msra.mxu0 0.0
        %407 = vmatprep.subr.mxu0 0.0
        %408 = vmatpush1.msra.mxu0 0.0
        %409 = vmatprep.subr.mxu0 0.0
        %410 = vmatpush1.msra.mxu0 0.0
        %411 = vmatprep.subr.mxu0 0.0
        %412 = vmatpush1.msra.mxu0 0.0
        %413 = vmatprep.subr.mxu0 0.0
        %414 = vmatpush1.msra.mxu0 0.0
        %415 = vmatprep.subr.mxu0 0.0
        %416 = vmatpush1.msra.mxu0 0.0
        %417 = vmatprep.subr.mxu0 0.0
        %418 = vmatpush1.msra.mxu0 0.0
        %419 = vmatprep.mubr.f32.mxu0 0.0
        %420 = vmatmul.mubr.f32.gmra.mrb[0].mxu0 %v236
        %v421 = vpop.f32.mrb[0].mxu0
        %v422 = vadd.f32 %v353, %v421
        %v423 = vpop.f32.mrb[0].mxu0
        %424 = vdwg.mxu0
        %v425 = vmul.f32 %v327, 0.5
        %v426 = vtanh.pop %v425
        %v427 = vmul.f32 %v426, 0.5
        %v428 = vadd.f32 %v427, 0.5
        %v429 = vmax.f32 %v422, 0.0
        %v430 = vsub.f32 %v236, %v429
        %v431 = vmul.f32 %v428, %v430
        %v432 = vadd.f32 %v429, %v431
        %433 = vst [vmem:[%s232] sm:$0xff] %v432
        %s434 = sand.u32 %s121, 1
        %s435 = scalar_lea.sflag [#allocation4], %s434
        %s436 = sand.u32 %s121, 1
        %s437 = smul.addr %s436, 8
        %s438 = scalar_lea.vmem [#allocation7], %s437
        // Predicated region
        $region41: #{tpu_custom_call.1} parent=31 // pred_check
          %p439 = pneg %p131
        $region42: #{tpu_custom_call.1} parent=31 // pred_check_branch
          %441 = sbr.rel (%p439) target = $region44
        $region43: #{tpu_custom_call.1} parent=31 // pred_region
          %s443 = ssub.s32 128, 128
          %444 = vsyncadd %s435, %s443
          %s445 = sadd.s32 %s25, %s26
          %s446 = smul.addr %s445, 128
          %s447 = scalar_lea.hbm %s3, %s446
          %s449 = sshll.u32 %s438, 4
          %s450 = int_to_ptr.vmem [resolvable:$true] %s449
          %452 = dma.vmem_to_hbm [thread:$0]  %s450, 128, %s447, %s435
        $region44: #{tpu_custom_call.1} parent=31 // pred_fallthru
          _
      $region32: #{tpu_custom_call.1} parent=5 // pred_fallthru
        _
      %p453 = scmp.le.s32.totalorder 2, %s16
      // Predicated region
      $region45: #{tpu_custom_call.1} parent=5 // pred_check
        %p454 = pneg %p453
      $region46: #{tpu_custom_call.1} parent=5 // pred_check_branch
        %456 = sbr.rel (%p454) target = $region48
      $region47: #{tpu_custom_call.1} parent=5 // pred_region
        %s457 = ssub.s32 %s16, 2
        // Predicated region
        $region49: #{tpu_custom_call.1} parent=47 // pred_check
          %p458 = pneg %p137
        $region50: #{tpu_custom_call.1} parent=47 // pred_check_branch
          %460 = sbr.rel (%p458) target = $region52
        $region51: #{tpu_custom_call.1} parent=47 // pred_region
          %s461 = sand.u32 %s122, 1
          %s462 = scalar_lea.sflag [#allocation4], %s461
          %s463 = sand.u32 %s122, 1
          %s464 = smul.addr %s463, 8
          %s465 = scalar_lea.vmem [#allocation7], %s464
          %466 = dma.done %s462, 128
        $region52: #{tpu_custom_call.1} parent=47 // pred_fallthru
          _
      $region48: #{tpu_custom_call.1} parent=5 // pred_fallthru
        _
    $region6: #{tpu_custom_call.1} parent=1 // loop_footer
      %s20 = sadd.s32 1, %s16
    $region7: #{tpu_custom_call.1} parent=1 // loop_footer_branch
      %15 = sbr.rel target = $region3
    $region8: #{tpu_custom_call.1} parent=1 // loop_exit
      _
    %467 = vsyncpa [#allocation3], 1
    %s468 = scalar_lea.sflag [#allocation3], 1
    %469 = vsyncpa %s468, 1
    %470 = vsyncpa [#allocation6], 1
    %471 = vsyncpa [#allocation4], 1
    %s472 = scalar_lea.sflag [#allocation4], 1
    %473 = vsyncpa %s472, 1

// kernel: tpu_custom_call.1
$region0: #{tpu_custom_call.1}
  #allocation0 [shape = 'u32[]', space=smem, size = 0x4, offset = 0x4, fixed_abs, tag = 'smem constant byte address 0x4 - core index']
  #allocation1 [shape = 'u32[144,128]{1,0:T(1,128)}', space=vmem, size = 0x12000, scoped, tag = 'internal scratch']
  %s0 = inlined_call_operand.hbm [shape: f32[16,128], index: 0, kind: input, shape index: {}]
  %s1 = inlined_call_operand.hbm [shape: f32[2,128,128], index: 1, kind: input, shape index: {}]
  %s2 = inlined_call_operand.vmem [shape: f32[2,1,128], index: 2, kind: input, shape index: {}]
  %s3 = inlined_call_operand.hbm [shape: f32[16,128], index: 3, kind: output, shape index: {}]
  %s4 = sld [smem:[#allocation0]]
  $region53: #{tpu_custom_call.1} parent=0
    _
  %s6 = ssub.s32 1, %s4
  %s7 = scalar_select 0, %s6, %s4
  $region1: #{tpu_custom_call.1} parent=0
    #allocation2 [shape = 'u8[8192]{0}', space=vmem, size = 0x2000, scoped, tag = 'input window, operand 0']
    #allocation3 [shape = 's32[2]{0}', space=sflag, size = 0x8, scoped, tag = 'scoped memory for tpu_custom_call.1']
    #allocation4 [shape = 's32[2]{0}', space=sflag, size = 0x8, scoped, tag = 'scoped memory for tpu_custom_call.1']
    #allocation5 [shape = 'u8[131072]{0}', space=vmem, size = 0x20000, scoped, tag = 'input window, operand 1, single buffered']
    #allocation6 [shape = 's32[1]{0}', space=sflag, size = 0x4, scoped, tag = 'scoped memory for tpu_custom_call.1']
    #allocation7 [shape = 'u8[8192]{0}', space=vmem, size = 0x2000, scoped, tag = 'output window, operand 0']
    %8 = vsyncpa [#allocation3], 0
    %s9 = scalar_lea.sflag [#allocation3], 1
    %10 = vsyncpa %s9, 0
    %11 = vsyncpa [#allocation6], 0
    %12 = vsyncpa [#allocation4], 0
    %s13 = scalar_lea.sflag [#allocation4], 1
    %14 = vsyncpa %s13, 0
    loop: start=0, step=1, limit=4
    $region2: #{tpu_custom_call.1} parent=1 // loop_pre_header
      _
    $region3: #{tpu_custom_call.1} parent=1 // loop_header
      %s16 = sphi 0, %s20
      %p17 = scmp.ge.s32.totalorder %s16, 4
      %s23 = sphi 0, %s35
      %s24 = sphi 0, %s31
      %s25 = sphi 0, %s23
      %s26 = sphi 0, %s24
      %s27 = sphi 0, %s25
      %s28 = sphi 0, %s26
      %s38 = sphi 0, %s40
      %s41 = sphi 0, %s38
      %s42 = sphi 0, %s41
      %s58 = sphi 0, %s42
      %s64 = sphi 0, %s66
      %s67 = sphi 0, %s64
      %s68 = sphi 0, %s67
      %s84 = sphi 0, %s68
      %s90 = sphi 0, %s92
      %s93 = sphi 0, %s90
      %s94 = sphi 0, %s93
      %s110 = sphi 0, %s94
      %s118 = sphi 0, %s120
      %s121 = sphi 0, %s118
      %s122 = sphi 0, %s121
      %s138 = sphi 0, %s122
    $region4: #{tpu_custom_call.1} parent=1 // loop_header_branch
      %19 = sbr.rel (%p17) target = $region8
    $region5: #{tpu_custom_call.1} parent=1 // loop_body
      %s21 = ssub.s32 %s16, 1
      %s22 = ssub.s32 %s16, 2
      %s29 = sadd.s32 1, %s24
      %p30 = scmp.ge.s32.totalorder %s29, 2
      %s31 = scalar_select %p30, 0, %s29
      %s32 = sadd.s32 1, %s23
      %s33 = scalar_select %p30, %s32, %s23
      %p34 = scmp.ge.s32.totalorder %s33, 1
      %s35 = scalar_select %p34, 0, %s33
      %s36 = ssub.s32 %s24, %s31
      %p37 = scmp.eq.s32.totalorder %s36, 0
      %s39 = sadd.s32 %s38, 1
      %s40 = scalar_select %p37, %s38, %s39
      %p43 = pneg %p37
      %p44 = scmp.eq.s32.totalorder %s16, 1
      %p45 = por %p43, %p44
      %p46 = scmp.ne.s32.totalorder %s38, %s41
      %p47 = scmp.eq.s32.totalorder %s16, 0
      %p48 = por %p46, %p47
      %p49 = scmp.ne.s32.totalorder %s38, %s41
      %p50 = scmp.eq.s32.totalorder %s21, 1
      %p51 = por %p49, %p50
      %p52 = scmp.ne.s32.totalorder %s41, %s42
      %p53 = scmp.eq.s32.totalorder %s21, 0
      %p54 = por %p52, %p53
      %p55 = scmp.ne.s32.totalorder %s41, %s42
      %p56 = scmp.eq.s32.totalorder %s22, 1
      %p57 = por %p55, %p56
      %p59 = scmp.ne.s32.totalorder %s42, %s58
      %p60 = scmp.eq.s32.totalorder %s22, 0
      %p61 = por %p59, %p60
      %s62 = ssub.s32 %s23, %s35
      %p63 = scmp.eq.s32.totalorder %s62, 0
      %s65 = sadd.s32 %s64, 1
      %s66 = scalar_select %p63, %s64, %s65
      %p69 = pneg %p63
      %p70 = scmp.eq.s32.totalorder %s16, 1
      %p71 = por %p69, %p70
      %p72 = scmp.ne.s32.totalorder %s64, %s67
      %p73 = scmp.eq.s32.totalorder %s16, 0
      %p74 = por %p72, %p73
      %p75 = scmp.ne.s32.totalorder %s64, %s67
      %p76 = scmp.eq.s32.totalorder %s21, 1
      %p77 = por %p75, %p76
      %p78 = scmp.ne.s32.totalorder %s67, %s68
      %p79 = scmp.eq.s32.totalorder %s21, 0
      %p80 = por %p78, %p79
      %p81 = scmp.ne.s32.totalorder %s67, %s68
      %p82 = scmp.eq.s32.totalorder %s22, 1
      %p83 = por %p81, %p82
      %p85 = scmp.ne.s32.totalorder %s68, %s84
      %p86 = scmp.eq.s32.totalorder %s22, 0
      %p87 = por %p85, %p86
      %s88 = ssub.s32 %s23, %s35
      %p89 = scmp.eq.s32.totalorder %s88, 0
      %s91 = sadd.s32 %s90, 1
      %s92 = scalar_select %p89, %s90, %s91
      %p95 = pneg %p89
      %p96 = scmp.eq.s32.totalorder %s16, 1
      %p97 = por %p95, %p96
      %p98 = scmp.ne.s32.totalorder %s90, %s93
      %p99 = scmp.eq.s32.totalorder %s16, 0
      %p100 = por %p98, %p99
      %p101 = scmp.ne.s32.totalorder %s90, %s93
      %p102 = scmp.eq.s32.totalorder %s21, 1
      %p103 = por %p101, %p102
      %p104 = scmp.ne.s32.totalorder %s93, %s94
      %p105 = scmp.eq.s32.totalorder %s21, 0
      %p106 = por %p104, %p105
      %p107 = scmp.ne.s32.totalorder %s93, %s94
      %p108 = scmp.eq.s32.totalorder %s22, 1
      %p109 = por %p107, %p108
      %p111 = scmp.ne.s32.totalorder %s94, %s110
      %p112 = scmp.eq.s32.totalorder %s22, 0
      %p113 = por %p111, %p112
      %s114 = ssub.s32 %s24, %s31
      %s115 = ssub.s32 %s23, %s35
      %s116 = sor.u32 %s114, %s115
      %p117 = scmp.eq.s32.totalorder %s116, 0
      %s119 = sadd.s32 %s118, 1
      %s120 = scalar_select %p117, %s118, %s119
      %p123 = pneg %p117
      %p124 = scmp.eq.s32.totalorder %s16, 1
      %p125 = por %p123, %p124
      %p126 = scmp.ne.s32.totalorder %s118, %s121
      %p127 = scmp.eq.s32.totalorder %s16, 0
      %p128 = por %p126, %p127
      %p129 = scmp.ne.s32.totalorder %s118, %s121
      %p130 = scmp.eq.s32.totalorder %s21, 1
      %p131 = por %p129, %p130
      %p132 = scmp.ne.s32.totalorder %s121, %s122
      %p133 = scmp.eq.s32.totalorder %s21, 0
      %p134 = por %p132, %p133
      %p135 = scmp.ne.s32.totalorder %s121, %s122
      %p136 = scmp.eq.s32.totalorder %s22, 1
      %p137 = por %p135, %p136
      %p139 = scmp.ne.s32.totalorder %s122, %s138
      %p140 = scmp.eq.s32.totalorder %s22, 0
      %p141 = por %p139, %p140
      %p142 = scmp.le.s32.totalorder 1, %s16
      %p143 = scmp.lt.s32.totalorder %s16, 3
      %p144 = pnand %p142, %p143
      %p145 = pneg %p144
      // Predicated region
      $region9: #{tpu_custom_call.1} parent=5 // pred_check
        _
      $region10: #{tpu_custom_call.1} parent=5 // pred_check_branch
        %147 = sbr.rel (%p144) target = $region12
      $region11: #{tpu_custom_call.1} parent=5 // pred_region
        %s148 = ssub.s32 %s16, 1
        // Predicated region
        $region13: #{tpu_custom_call.1} parent=11 // pred_check
          %p149 = pneg %p80
        $region14: #{tpu_custom_call.1} parent=11 // pred_check_branch
          %151 = sbr.rel (%p149) target = $region16
        $region15: #{tpu_custom_call.1} parent=11 // pred_region
          %s153 = ssub.s32 4096, 4096
          %154 = vsyncadd [#allocation6], %s153
          %s155 = smul.addr %s25, 128
          %s156 = scalar_lea.hbm %s1, %s155
          %s157 = sshll.u32 [#allocation5], 4
          %s158 = int_to_ptr.vmem [resolvable:$true] %s157
          %163 = dma.hbm_to_vmem [thread:$0]  %s156, 4096, %s158, [#allocation6], 128, 128, 8
        $region16: #{tpu_custom_call.1} parent=11 // pred_fallthru
          _
        // Predicated region
        $region17: #{tpu_custom_call.1} parent=11 // pred_check
          %p164 = pneg %p106
        $region18: #{tpu_custom_call.1} parent=11 // pred_check_branch
          %166 = sbr.rel (%p164) target = $region20
        $region19: #{tpu_custom_call.1} parent=11 // pred_region
          %p167 = scmp.lt.s32.totalorder %s25, 0
          %s168 = scalar_select %p167, %s25, 0
          %s169 = scalar_lea.vmem %s2, %s168
        $region20: #{tpu_custom_call.1} parent=11 // pred_fallthru
          _
      $region12: #{tpu_custom_call.1} parent=5 // pred_fallthru
        _
      %p170 = scmp.lt.s32.totalorder %s16, 2
      // Predicated region
      $region21: #{tpu_custom_call.1} parent=5 // pred_check
        %p171 = pneg %p170
      $region22: #{tpu_custom_call.1} parent=5 // pred_check_branch
        %173 = sbr.rel (%p171) target = $region24
      $region23: #{tpu_custom_call.1} parent=5 // pred_region
        // Predicated region
        $region25: #{tpu_custom_call.1} parent=23 // pred_check
          %p174 = pneg %p48
        $region26: #{tpu_custom_call.1} parent=23 // pred_check_branch
          %176 = sbr.rel (%p174) target = $region28
        $region27: #{tpu_custom_call.1} parent=23 // pred_region
          %s177 = sand.u32 %s38, 1
          %s178 = scalar_lea.sflag [#allocation3], %s177
          %s179 = sand.u32 %s38, 1
          %s180 = smul.addr %s179, 8
          %s181 = scalar_lea.vmem [#allocation2], %s180
          %s183 = ssub.s32 128, 128
          %184 = vsyncadd %s178, %s183
          %s185 = smul.addr %s24, 128
          %s186 = scalar_lea.hbm %s0, %s185
          %s188 = sshll.u32 %s181, 4
          %s189 = int_to_ptr.vmem [resolvable:$true] %s188
          %191 = dma.hbm_to_vmem [thread:$0]  %s186, 128, %s189, %s178
        $region28: #{tpu_custom_call.1} parent=23 // pred_fallthru
          _
      $region24: #{tpu_custom_call.1} parent=5 // pred_fallthru
        _
      %p192 = scmp.le.s32.totalorder 1, %s16
      %p193 = scmp.lt.s32.totalorder %s16, 3
      %p194 = pnand %p192, %p193
      %p195 = pneg %p194
      // Predicated region
      $region29: #{tpu_custom_call.1} parent=5 // pred_check
        _
      $region30: #{tpu_custom_call.1} parent=5 // pred_check_branch
        %197 = sbr.rel (%p194) target = $region32
      $region31: #{tpu_custom_call.1} parent=5 // pred_region
        %s198 = ssub.s32 %s16, 1
        %s199 = sand.u32 %s41, 1
        %s200 = scalar_lea.sflag [#allocation3], %s199
        %s201 = sand.u32 %s41, 1
        %s202 = smul.addr %s201, 8
        %s203 = scalar_lea.vmem [#allocation2], %s202
        // Predicated region
        $region33: #{tpu_custom_call.1} parent=31 // pred_check
          %p204 = pneg %p54
        $region34: #{tpu_custom_call.1} parent=31 // pred_check_branch
          %206 = sbr.rel (%p204) target = $region36
        $region35: #{tpu_custom_call.1} parent=31 // pred_region
          %207 = dma.done %s200, 128
        $region36: #{tpu_custom_call.1} parent=31 // pred_fallthru
          _
        // Predicated region
        $region37: #{tpu_custom_call.1} parent=31 // pred_check
          %p208 = pneg %p80
        $region38: #{tpu_custom_call.1} parent=31 // pred_check_branch
          %210 = sbr.rel (%p208) target = $region40
        $region39: #{tpu_custom_call.1} parent=31 // pred_region
          %211 = dma.done [#allocation6], 4096
        $region40: #{tpu_custom_call.1} parent=31 // pred_fallthru
          _
        %s212 = sand.u32 %s41, 1
        %s213 = scalar_lea.sflag [#allocation3], %s212
        %s214 = sand.u32 %s41, 1
        %s215 = smul.addr %s214, 8
        %s216 = scalar_lea.vmem [#allocation2], %s215
        %p217 = pneg %p54
        %p218 = pneg %p51
        %p219 = pneg %p80
        %p220 = pneg %p77
        %p221 = scmp.lt.s32.totalorder %s25, 0
        %s222 = scalar_select %p221, %s25, 0
        %s223 = scalar_lea.vmem %s2, %s222
        %p224 = pneg %p106
        %p225 = pneg %p103
        %p226 = pneg %p134
        %p227 = pneg %p131
        %s228 = sand.u32 %s121, 1
        %s229 = scalar_lea.sflag [#allocation4], %s228
        %s230 = sand.u32 %s121, 1
        %s231 = smul.addr %s230, 8
        %s232 = scalar_lea.vmem [#allocation7], %s231
        %p233 = scmp.lt.s32.totalorder %s25, 0
        %s234 = scalar_select %p233, %s25, 0
        %s235 = scalar_lea.vmem %s2, %s234
        %v236 = vld [vmem:[%s203] sm:$0xff]
        %v237 = vld [vmem:[#allocation5] sm:$0xff]
        %v238 = vld [vmem:[#allocation5 + $0x8] sm:$0xff]
        %v239 = vld [vmem:[#allocation5 + $0x10] sm:$0xff]
        %v240 = vld [vmem:[#allocation5 + $0x18] sm:$0xff]
        %v241 = vld [vmem:[#allocation5 + $0x20] sm:$0xff]
        %v242 = vld [vmem:[#allocation5 + $0x28] sm:$0xff]
        %v243 = vld [vmem:[#allocation5 + $0x30] sm:$0xff]
        %v244 = vld [vmem:[#allocation5 + $0x38] sm:$0xff]
        %v245 = vld [vmem:[#allocation5 + $0x40] sm:$0xff]
        %v246 = vld [vmem:[#allocation5 + $0x48] sm:$0xff]
        %v247 = vld [vmem:[#allocation5 + $0x50] sm:$0xff]
        %v248 = vld [vmem:[#allocation5 + $0x58] sm:$0xff]
        %v249 = vld [vmem:[#allocation5 + $0x60] sm:$0xff]
        %v250 = vld [vmem:[#allocation5 + $0x68] sm:$0xff]
        %v251 = vld [vmem:[#allocation5 + $0x70] sm:$0xff]
        %v252 = vld [vmem:[#allocation5 + $0x78] sm:$0xff]
        %v253 = vld [vmem:[%s235] sm:$0x1]
        %v255 = vlaneseq
        %v256 = vshrl.u32 %v255, 7
        %v257 = vsub.s32 0, %v256
        %v258 = vrot.slane %v253, %v257
        %260 = vmatprep.subr.mxu0 0.0
        %261 = vmatpush1.msra.mxu0 %v237
        %262 = vmatprep.subr.mxu0 0.0
        %263 = vmatpush1.msra.mxu0 %v238
        %264 = vmatprep.subr.mxu0 0.0
        %265 = vmatpush1.msra.mxu0 %v239
        %266 = vmatprep.subr.mxu0 0.0
        %267 = vmatpush1.msra.mxu0 %v240
        %268 = vmatprep.subr.mxu0 0.0
        %269 = vmatpush1.msra.mxu0 %v241
        %270 = vmatprep.subr.mxu0 0.0
        %271 = vmatpush1.msra.mxu0 %v242
        %272 = vmatprep.subr.mxu0 0.0
        %273 = vmatpush1.msra.mxu0 %v243
        %274 = vmatprep.subr.mxu0 0.0
        %275 = vmatpush1.msra.mxu0 %v244
        %276 = vmatprep.subr.mxu0 0.0
        %277 = vmatpush1.msra.mxu0 %v245
        %278 = vmatprep.subr.mxu0 0.0
        %279 = vmatpush1.msra.mxu0 %v246
        %280 = vmatprep.subr.mxu0 0.0
        %281 = vmatpush1.msra.mxu0 %v247
        %282 = vmatprep.subr.mxu0 0.0
        %283 = vmatpush1.msra.mxu0 %v248
        %284 = vmatprep.subr.mxu0 0.0
        %285 = vmatpush1.msra.mxu0 %v249
        %286 = vmatprep.subr.mxu0 0.0
        %287 = vmatpush1.msra.mxu0 %v250
        %288 = vmatprep.subr.mxu0 0.0
        %289 = vmatpush1.msra.mxu0 %v251
        %290 = vmatprep.subr.mxu0 0.0
        %291 = vmatpush1.msra.mxu0 %v252
        %292 = vmatprep.subr.mxu0 0.0
        %293 = vmatpush1.msra.mxu0 0.0
        %294 = vmatprep.subr.mxu0 0.0
        %295 = vmatpush1.msra.mxu0 0.0
        %296 = vmatprep.subr.mxu0 0.0
        %297 = vmatpush1.msra.mxu0 0.0
        %298 = vmatprep.subr.mxu0 0.0
        %299 = vmatpush1.msra.mxu0 0.0
        %300 = vmatprep.subr.mxu0 0.0
        %301 = vmatpush1.msra.mxu0 0.0
        %302 = vmatprep.subr.mxu0 0.0
        %303 = vmatpush1.msra.mxu0 0.0
        %304 = vmatprep.subr.mxu0 0.0
        %305 = vmatpush1.msra.mxu0 0.0
        %306 = vmatprep.subr.mxu0 0.0
        %307 = vmatpush1.msra.mxu0 0.0
        %308 = vmatprep.subr.mxu0 0.0
        %309 = vmatpush1.msra.mxu0 0.0
        %310 = vmatprep.subr.mxu0 0.0
        %311 = vmatpush1.msra.mxu0 0.0
        %312 = vmatprep.subr.mxu0 0.0
        %313 = vmatpush1.msra.mxu0 0.0
        %314 = vmatprep.subr.mxu0 0.0
        %315 = vmatpush1.msra.mxu0 0.0
        %316 = vmatprep.subr.mxu0 0.0
        %317 = vmatpush1.msra.mxu0 0.0
        %318 = vmatprep.subr.mxu0 0.0
        %319 = vmatpush1.msra.mxu0 0.0
        %320 = vmatprep.subr.mxu0 0.0
        %321 = vmatpush1.msra.mxu0 0.0
        %322 = vmatprep.subr.mxu0 0.0
        %323 = vmatpush1.msra.mxu0 0.0
        %324 = vmatprep.mubr.f32.mxu0 0.0
        %325 = vmatmul.mubr.f32.gmra.mrb[0].mxu0 %v236
        %v326 = vpop.f32.mrb[0].mxu0
        %v327 = vadd.f32 %v258, %v326
        %v328 = vpop.f32.mrb[0].mxu0
        %329 = vdwg.mxu0
        %s330 = scalar_lea.vmem [#allocation5], 128
        %v331 = vld [vmem:[%s330] sm:$0xff]
        %v332 = vld [vmem:[%s330 + $0x8] sm:$0xff]
        %v333 = vld [vmem:[%s330 + $0x10] sm:$0xff]
        %v334 = vld [vmem:[%s330 + $0x18] sm:$0xff]
        %v335 = vld [vmem:[%s330 + $0x20] sm:$0xff]
        %v336 = vld [vmem:[%s330 + $0x28] sm:$0xff]
        %v337 = vld [vmem:[%s330 + $0x30] sm:$0xff]
        %v338 = vld [vmem:[%s330 + $0x38] sm:$0xff]
        %v339 = vld [vmem:[%s330 + $0x40] sm:$0xff]
        %v340 = vld [vmem:[%s330 + $0x48] sm:$0xff]
        %v341 = vld [vmem:[%s330 + $0x50] sm:$0xff]
        %v342 = vld [vmem:[%s330 + $0x58] sm:$0xff]
        %v343 = vld [vmem:[%s330 + $0x60] sm:$0xff]
        %v344 = vld [vmem:[%s330 + $0x68] sm:$0xff]
        %v345 = vld [vmem:[%s330 + $0x70] sm:$0xff]
        %v346 = vld [vmem:[%s330 + $0x78] sm:$0xff]
        %s347 = scalar_lea.vmem %s235, 1
        %v348 = vld [vmem:[%s347] sm:$0x1]
        %v350 = vlaneseq
        %v351 = vshrl.u32 %v350, 7
        %v352 = vsub.s32 0, %v351
        %v353 = vrot.slane %v348, %v352
        %355 = vmatprep.subr.mxu0 0.0
        %356 = vmatpush1.msra.mxu0 %v331
        %357 = vmatprep.subr.mxu0 0.0
        %358 = vmatpush1.msra.mxu0 %v332
        %359 = vmatprep.subr.mxu0 0.0
        %360 = vmatpush1.msra.mxu0 %v333
        %361 = vmatprep.subr.mxu0 0.0
        %362 = vmatpush1.msra.mxu0 %v334
        %363 = vmatprep.subr.mxu0 0.0
        %364 = vmatpush1.msra.mxu0 %v335
        %365 = vmatprep.subr.mxu0 0.0
        %366 = vmatpush1.msra.mxu0 %v336
        %367 = vmatprep.subr.mxu0 0.0
        %368 = vmatpush1.msra.mxu0 %v337
        %369 = vmatprep.subr.mxu0 0.0
        %370 = vmatpush1.msra.mxu0 %v338
        %371 = vmatprep.subr.mxu0 0.0
        %372 = vmatpush1.msra.mxu0 %v339
        %373 = vmatprep.subr.mxu0 0.0
        %374 = vmatpush1.msra.mxu0 %v340
        %375 = vmatprep.subr.mxu0 0.0
        %376 = vmatpush1.msra.mxu0 %v341
        %377 = vmatprep.subr.mxu0 0.0
        %378 = vmatpush1.msra.mxu0 %v342
        %379 = vmatprep.subr.mxu0 0.0
        %380 = vmatpush1.msra.mxu0 %v343
        %381 = vmatprep.subr.mxu0 0.0
        %382 = vmatpush1.msra.mxu0 %v344
        %383 = vmatprep.subr.mxu0 0.0
        %384 = vmatpush1.msra.mxu0 %v345
        %385 = vmatprep.subr.mxu0 0.0
        %386 = vmatpush1.msra.mxu0 %v346
        %387 = vmatprep.subr.mxu0 0.0
        %388 = vmatpush1.msra.mxu0 0.0
        %389 = vmatprep.subr.mxu0 0.0
        %390 = vmatpush1.msra.mxu0 0.0
        %391 = vmatprep.subr.mxu0 0.0
        %392 = vmatpush1.msra.mxu0 0.0
        %393 = vmatprep.subr.mxu0 0.0
        %394 = vmatpush1.msra.mxu0 0.0
        %395 = vmatprep.subr.mxu0 0.0
        %396 = vmatpush1.msra.mxu0 0.0
        %397 = vmatprep.subr.mxu0 0.0
        %398 = vmatpush1.msra.mxu0 0.0
        %399 = vmatprep.subr.mxu0 0.0
        %400 = vmatpush1.msra.mxu0 0.0
        %401 = vmatprep.subr.mxu0 0.0
        %402 = vmatpush1.msra.mxu0 0.0
        %403 = vmatprep.subr.mxu0 0.0
        %404 = vmatpush1.msra.mxu0 0.0
        %405 = vmatprep.subr.mxu0 0.0
        %406 = vmatpush1.msra.mxu0 0.0
        %407 = vmatprep.subr.mxu0 0.0
        %408 = vmatpush1.msra.mxu0 0.0
        %409 = vmatprep.subr.mxu0 0.0
        %410 = vmatpush1.msra.mxu0 0.0
        %411 = vmatprep.subr.mxu0 0.0
        %412 = vmatpush1.msra.mxu0 0.0
        %413 = vmatprep.subr.mxu0 0.0
        %414 = vmatpush1.msra.mxu0 0.0
        %415 = vmatprep.subr.mxu0 0.0
        %416 = vmatpush1.msra.mxu0 0.0
        %417 = vmatprep.subr.mxu0 0.0
        %418 = vmatpush1.msra.mxu0 0.0
        %419 = vmatprep.mubr.f32.mxu0 0.0
        %420 = vmatmul.mubr.f32.gmra.mrb[0].mxu0 %v236
        %v421 = vpop.f32.mrb[0].mxu0
        %v422 = vadd.f32 %v353, %v421
        %v423 = vpop.f32.mrb[0].mxu0
        %424 = vdwg.mxu0
        %v425 = vmul.f32 %v327, 0.5
        %v426 = vtanh.pop %v425
        %v427 = vmul.f32 %v426, 0.5
        %v428 = vadd.f32 %v427, 0.5
        %v429 = vmax.f32 %v422, 0.0
        %v430 = vsub.f32 %v236, %v429
        %v431 = vmul.f32 %v428, %v430
        %v432 = vadd.f32 %v429, %v431
        %433 = vst [vmem:[%s232] sm:$0xff] %v432
        %s434 = sand.u32 %s121, 1
        %s435 = scalar_lea.sflag [#allocation4], %s434
        %s436 = sand.u32 %s121, 1
        %s437 = smul.addr %s436, 8
        %s438 = scalar_lea.vmem [#allocation7], %s437
        // Predicated region
        $region41: #{tpu_custom_call.1} parent=31 // pred_check
          %p439 = pneg %p131
        $region42: #{tpu_custom_call.1} parent=31 // pred_check_branch
          %441 = sbr.rel (%p439) target = $region44
        $region43: #{tpu_custom_call.1} parent=31 // pred_region
          %s443 = ssub.s32 128, 128
          %444 = vsyncadd %s435, %s443
          %s445 = sadd.s32 %s25, %s26
          %s446 = smul.addr %s445, 128
          %s447 = scalar_lea.hbm %s3, %s446
          %s449 = sshll.u32 %s438, 4
          %s450 = int_to_ptr.vmem [resolvable:$true] %s449
          %452 = dma.vmem_to_hbm [thread:$0]  %s450, 128, %s447, %s435
        $region44: #{tpu_custom_call.1} parent=31 // pred_fallthru
          _
      $region32: #{tpu_custom_call.1} parent=5 // pred_fallthru
        _
      %p453 = scmp.le.s32.totalorder 2, %s16
      // Predicated region
      $region45: #{tpu_custom_call.1} parent=5 // pred_check
        %p454 = pneg %p453
      $region46: #{tpu_custom_call.1} parent=5 // pred_check_branch
        %456 = sbr.rel (%p454) target = $region48
      $region47: #{tpu_custom_call.1} parent=5 // pred_region
        %s457 = ssub.s32 %s16, 2
        // Predicated region
        $region49: #{tpu_custom_call.1} parent=47 // pred_check
          %p458 = pneg %p137
        $region50: #{tpu_custom_call.1} parent=47 // pred_check_branch
          %460 = sbr.rel (%p458) target = $region52
        $region51: #{tpu_custom_call.1} parent=47 // pred_region
          %s461 = sand.u32 %s122, 1
          %s462 = scalar_lea.sflag [#allocation4], %s461
          %s463 = sand.u32 %s122, 1
          %s464 = smul.addr %s463, 8
          %s465 = scalar_lea.vmem [#allocation7], %s464
          %466 = dma.done %s462, 128
        $region52: #{tpu_custom_call.1} parent=47 // pred_fallthru
          _
      $region48: #{tpu_custom_call.1} parent=5 // pred_fallthru
        _
    $region6: #{tpu_custom_call.1} parent=1 // loop_footer
      %s20 = sadd.s32 1, %s16
    $region7: #{tpu_custom_call.1} parent=1 // loop_footer_branch
      %15 = sbr.rel target = $region3
    $region8: #{tpu_custom_call.1} parent=1 // loop_exit
      _
    %467 = vsyncpa [#allocation3], 1
    %s468 = scalar_lea.sflag [#allocation3], 1
    %469 = vsyncpa %s468, 1
    %470 = vsyncpa [#allocation6], 1
    %471 = vsyncpa [#allocation4], 1
    %s472 = scalar_lea.sflag [#allocation4], 1
    %473 = vsyncpa %s472, 1

</llo_original>
